<compile_context>
chip_gen: v5e
topology: v5e:2x2
jax: 0.10.0
libtpu: 0.0.40
codegen_flags: <defaults>
</compile_context>

<pallas_src>
import functools

import numpy as np
import jax
import jax.numpy as jnp
from jax.experimental import pallas as pl
from jax.experimental.pallas import tpu as pltpu


def _round_up(x, m):
    return (x + m - 1) // m * m


def _default_vmem_limit_bytes():
    """~75% of per-core physical VMEM, capped; leaves compiler-scratch headroom."""
    phys = 64 * 1024 * 1024  # conservative fallback (v7x size)
    try:
        phys = int(pltpu.get_tpu_info().vmem_capacity_bytes)
    except Exception:  # older API / query failure: keep conservative default
        pass
    return int(min(phys * 3 // 4, 100 * 1024 * 1024))


# ------------------------------------------------------------------------------
# Kernel
# ------------------------------------------------------------------------------
def dendritic_kernel(x_ref, wd_ref, bd_ref, wsc_ref, bs_ref, out_ref, *,
                     n_dendrites, n_pad):
    """One batch tile: fused wide dendrite matmul + LeakyReLU + block-diag soma.

    x_ref   : (TB, D)            compute dtype (bf16 or f32), streamed per tile
    wd_ref  : (D, nd*N_pad)      compute dtype, VMEM-resident (single buffer)
    bd_ref  : (1, nd*N_pad)      f32 dendrite bias
    wsc_ref : (nd, 1, N_pad)     f32 compacted block-diagonal soma weights
    bs_ref  : (1, N_pad)         f32 soma bias
    out_ref : (TB, N_pad)        output tile (lane-dense store)
    """
    x = x_ref[...]
    # One wide MXU matmul: amortizes fill/drain across all dendrite slots.
    d = jnp.dot(x, wd_ref[...], preferred_element_type=jnp.float32)   # (TB, nd*N_pad)
    d = d + bd_ref[...]                                               # dendrite bias
    d = jnp.maximum(d, 0.1 * d)                                       # LeakyReLU(0.1)

    # Block-diagonal soma contraction: nd lane-dense MACs on static,
    # 128-lane-aligned slices. Accumulator seeded with the soma bias.
    acc = jnp.broadcast_to(bs_ref[...], out_ref.shape).astype(jnp.float32)
    for j in range(n_dendrites):
        acc = acc + d[:, j * n_pad:(j + 1) * n_pad] * wsc_ref[j]
    acc = jnp.maximum(acc, 0.1 * acc)                                 # soma LeakyReLU(0.1)
    out_ref[...] = acc.astype(out_ref.dtype)


# ------------------------------------------------------------------------------
# Wrapper-side weight re-layout (call ONCE per weight update, reuse after)
# ------------------------------------------------------------------------------
def prepare_dendritic_params(dendrite_W, dendrite_mask, dendrite_b,
                             soma_W, soma_mask, soma_b, *,
                             n_neurons, n_dendrites,
                             compute_dtype=jnp.bfloat16, validate=True):
    """Fold masks and re-lay-out the weights for the kernel.

    Must be re-run after any optimizer step or resample_dendrites() call so the
    kernel never sees stale / unmasked weights.
    """
    in_dim = dendrite_W.shape[1]
    n_pad = _round_up(n_neurons, 128)  # lane-dense output / RHS

    if validate:
        # The kernel compacts the soma matmul assuming an exactly block-diagonal
        # soma_mask (neuron i <- its own n_dendrites dendrites, stride nd).
        sm = np.asarray(soma_mask)
        rows = np.arange(n_neurons)[:, None]
        cols = np.arange(n_neurons * n_dendrites)[None, :]
        expected = (cols // n_dendrites == rows).astype(sm.dtype)
        if not np.array_equal(sm, expected):
            raise ValueError(
                "soma_mask is not block-diagonal with stride n_dendrites; the "
                "compacted soma kernel would be incorrect for this mask.")

    # Dendrite weights: fold mask, pre-transpose so the kernel feeds the MXU a
    # [K-major, lane=nd*N_pad] RHS directly.  Column j*N_pad + i holds the
    # weights of neuron i's dendrite slot j.
    wd = (dendrite_W * dendrite_mask).astype(jnp.float32)            # (N*nd, D)
    wd_r = wd.reshape(n_neurons, n_dendrites, in_dim)                # (N, nd, D)
    wd_r = jnp.transpose(wd_r, (2, 1, 0))                            # (D, nd, N)
    wd_r = jnp.pad(wd_r, ((0, 0), (0, 0), (0, n_pad - n_neurons)))
    wd_flat = wd_r.reshape(in_dim, n_dendrites * n_pad).astype(compute_dtype)

    bd_r = dendrite_b.reshape(n_neurons, n_dendrites).T              # (nd, N)
    bd_r = jnp.pad(bd_r, ((0, 0), (0, n_pad - n_neurons)))
    bd_flat = bd_r.reshape(1, n_dendrites * n_pad).astype(jnp.float32)

    # Compact block-diagonal soma weights: ws_c[j, 0, i] = soma_W[i, i*nd + j].
    sw = (soma_W * soma_mask).astype(jnp.float32)
    diag = jnp.arange(n_neurons)
    ws_c = sw.reshape(n_neurons, n_neurons, n_dendrites)[diag, diag, :]  # (N, nd)
    ws_c = jnp.pad(ws_c.T, ((0, 0), (0, n_pad - n_neurons)))             # (nd, N_pad)
    ws_c = ws_c.reshape(n_dendrites, 1, n_pad).astype(jnp.float32)

    bs = jnp.pad(soma_b, (0, n_pad - n_neurons)).reshape(1, n_pad)
    bs = bs.astype(jnp.float32)

    return (wd_flat, bd_flat, ws_c, bs)


# ------------------------------------------------------------------------------
# Forward pass
# ------------------------------------------------------------------------------
def dendritic_forward(x, prepared, *, n_neurons, n_dendrites,
                      block_b=1024, vmem_limit_bytes=None):
    wd_flat, bd_flat, ws_c, bs = prepared
    B, in_dim = x.shape
    out_dtype = x.dtype
    n_pad = bs.shape[-1]
    assert wd_flat.shape == (in_dim, n_dendrites * n_pad)

    compute_dtype = wd_flat.dtype
    itemsize_c = jnp.dtype(compute_dtype).itemsize
    itemsize_o = jnp.dtype(out_dtype).itemsize
    sub = 16 if itemsize_c == 2 else 8              # sublane multiple per dtype

    if vmem_limit_bytes is None:
        vmem_limit_bytes = _default_vmem_limit_bytes()

    # --- batch tile selection -------------------------------------------------
    # VMEM budget: single-buffered weight slab + per-row cost of the
    # double-buffered x/out tiles and the f32 dendrite/accumulator intermediates.
    weight_bytes = (wd_flat.size * itemsize_c
                    + (bd_flat.size + ws_c.size + bs.size) * 4)
    budget = max(vmem_limit_bytes - weight_bytes, 1 << 20)
    per_row = (2 * in_dim * itemsize_c              # x tile (2 pipeline buffers)
               + 2 * n_pad * itemsize_o             # out tile (2 pipeline buffers)
               + (n_dendrites + 1) * n_pad * 4)     # f32 wide intermediate + acc
    tb_cap = int(budget * 0.7) // per_row
    tb_cap = max(sub, (tb_cap // sub) * sub)

    # >= 2 grid steps whenever B allows (v7x: 2 TensorCores, batch is "parallel").
    if B <= sub:
        tb = _round_up(B, sub)
    else:
        half = _round_up((B + 1) // 2, sub)
        tb = min(block_b, half)
    TB = max(sub, min(tb, tb_cap))

    B_pad = _round_up(B, TB)
    if B_pad != B:
        x = jnp.pad(x, ((0, B_pad - B), (0, 0)))
    x_c = x.astype(compute_dtype)

    grid = (B_pad // TB,)
    kernel = functools.partial(dendritic_kernel,
                               n_dendrites=n_dendrites, n_pad=n_pad)

    # TODO(synk): for very large layers where the single-buffered weight slab
    # exceeds ~1/3 of VMEM, add a second grid axis over n_pad (weights (0, n),
    # out (i, n), x pinned) instead of shrinking TB.
    out = pl.pallas_call(
        kernel,
        out_shape=jax.ShapeDtypeStruct((B_pad, n_pad), out_dtype),
        grid=grid,
        in_specs=[
            # streamed per batch tile (double-buffered by the Pallas pipeline)
            pl.BlockSpec((TB, in_dim), lambda i: (i, 0)),
            # weights / biases: whole-array VMEM residents (single-buffered)
            pl.BlockSpec(memory_space=pltpu.MemorySpace.VMEM),
            pl.BlockSpec(memory_space=pltpu.MemorySpace.VMEM),
            pl.BlockSpec(memory_space=pltpu.MemorySpace.VMEM),
            pl.BlockSpec(memory_space=pltpu.MemorySpace.VMEM),
        ],
        out_specs=pl.BlockSpec((TB, n_pad), lambda i: (i, 0)),
        compiler_params=pltpu.CompilerParams(
            dimension_semantics=("parallel",),      # megacore split on v7x
            vmem_limit_bytes=int(vmem_limit_bytes)),
    )(x_c, wd_flat, bd_flat, ws_c, bs)

    return out[:B, :n_neurons]


def dendritic_layer_forward(x, dendrite_W, dendrite_mask, dendrite_b,
                            soma_W, soma_mask, soma_b, *,
                            n_neurons, n_dendrites,
                            compute_dtype=jnp.bfloat16, block_b=1024):
    """Convenience one-shot wrapper (prepare + forward). Prefer caching the
    output of prepare_dendritic_params() across repeated forwards."""
    prepared = prepare_dendritic_params(
        dendrite_W, dendrite_mask, dendrite_b, soma_W, soma_mask, soma_b,
        n_neurons=n_neurons, n_dendrites=n_dendrites,
        compute_dtype=compute_dtype)
    return dendritic_forward(x, prepared, n_neurons=n_neurons,
                             n_dendrites=n_dendrites, block_b=block_b)


# ------------------------------------------------------------------------------
# Parameter construction + reference
# ------------------------------------------------------------------------------
def make_params(key, in_dim, n_neurons, n_dendrite_inputs, n_dendrites):
    """Deterministic parameter / mask construction mirroring __init__."""
    n_soma_connections = n_dendrites * n_neurons
    k_wd, k_ws = jax.random.split(key, 2)

    dendrite_W = jax.random.normal(
        k_wd, (n_soma_connections, in_dim), jnp.float32) * np.sqrt(2.0 / in_dim)
    dendrite_b = jnp.zeros((n_soma_connections,), jnp.float32)
    soma_W = jax.random.normal(
        k_ws, (n_neurons, n_soma_connections),
        jnp.float32) * np.sqrt(2.0 / n_soma_connections)
    soma_b = jnp.zeros((n_neurons,), jnp.float32)

    # Soma mask: neuron i connects to its own n_dendrites dendrites (block diag).
    soma_mask = np.zeros((n_neurons, n_soma_connections), np.float32)
    for i in range(n_neurons):
        soma_mask[i, i * n_dendrites:(i + 1) * n_dendrites] = 1.0
    soma_mask = jnp.asarray(soma_mask)

    # Dendrite mask: each dendrite receives n_dendrite_inputs random inputs.
    rng = np.random.RandomState(0)
    dendrite_mask = np.zeros((n_soma_connections, in_dim), np.float32)
    for i in range(n_soma_connections):
        idx = rng.permutation(in_dim)[:n_dendrite_inputs]
        dendrite_mask[i, idx] = 1.0
    dendrite_mask = jnp.asarray(dendrite_mask)

    # __init__ pre-masks the weights (prepare masks again; idempotent).
    dendrite_W = dendrite_W * dendrite_mask
    soma_W = soma_W * soma_mask
    return dendrite_W, dendrite_mask, dendrite_b, soma_W, soma_mask, soma_b


def reference_forward(x, dendrite_W, dendrite_mask, dendrite_b,
                      soma_W, soma_mask, soma_b):
    # LeakyReLU negative_slope=0.1, matching the PyTorch module.
    leaky = lambda v: jnp.where(v >= 0, v, 0.1 * v)
    d = leaky(x @ (dendrite_W * dendrite_mask).T + dendrite_b)
    return leaky(d @ (soma_W * soma_mask).T + soma_b)


if __name__ == "__main__":
    # Small, forward-consistent shapes.
    B = 8
    in_dim = 32
    n_neurons = 8
    n_dendrites = 4
    n_dendrite_inputs = 8

    key = jax.random.PRNGKey(0)
    k_params, k_x = jax.random.split(key)
    params = make_params(k_params, in_dim, n_neurons, n_dendrite_inputs,
                         n_dendrites)
    x = jax.random.normal(k_x, (B, in_dim), jnp.float32)
    ref = reference_forward(x, *params)

    # f32 bit-parity path.
    prep_f32 = prepare_dendritic_params(
        *params, n_neurons=n_neurons, n_dendrites=n_dendrites,
        compute_dtype=jnp.float32)
    out_f32 = dendritic_forward(x, prep_f32, n_neurons=n_neurons,
                                n_dendrites=n_dendrites)
    out_f32 = jax.block_until_ready(out_f32)
    np.testing.assert_allclose(np.asarray(out_f32), np.asarray(ref),
                               rtol=1e-5, atol=1e-5)

    # Default bf16 MXU path (f32 accumulation + f32 epilogue): looser tolerance.
    prep_bf16 = prepare_dendritic_params(
        *params, n_neurons=n_neurons, n_dendrites=n_dendrites)
    out_bf16 = dendritic_forward(x, prep_bf16, n_neurons=n_neurons,
                                 n_dendrites=n_dendrites)
    out_bf16 = jax.block_until_ready(out_bf16)
    np.testing.assert_allclose(np.asarray(out_bf16), np.asarray(ref),
                               rtol=5e-2, atol=5e-2)

    # TODO(synk): resample_dendrites (training-time synaptic plasticity) is
    # stateful/host-side logic and not part of the forward kernel; after it (or
    # any optimizer step) re-run prepare_dendritic_params() to re-fold masks.
    print("KERNEL_OK")
</pallas_src>

<mosaic_0001>
module attributes {stable_mosaic.version = 11 : i64} {
  func.func @dendritic_kernel(%arg0: i32, %arg1: memref<8x32xf32, #tpu.memory_space<vmem>>, %arg2: memref<32x512xf32, #tpu.memory_space<vmem>>, %arg3: memref<1x512xf32, #tpu.memory_space<vmem>>, %arg4: memref<4x1x128xf32, #tpu.memory_space<vmem>>, %arg5: memref<1x128xf32, #tpu.memory_space<vmem>>, %arg6: memref<8x128xf32, #tpu.memory_space<vmem>>) attributes {dimension_semantics = [#tpu.dimension_semantics<parallel>], iteration_bounds = array<i64: 1>, scalar_prefetch = 0 : i64, scratch_operands = 0 : i64, tpu.core_type = #tpu.core_type<tc>, window_params = [{transform_indices = @transform_0, window_bounds = array<i64: 8, 32>}, {pipeline_mode = #tpu.pipeline_mode<synchronous>, transform_indices = @transform_1, window_bounds = array<i64: 32, 512>}, {pipeline_mode = #tpu.pipeline_mode<synchronous>, transform_indices = @transform_2, window_bounds = array<i64: 1, 512>}, {pipeline_mode = #tpu.pipeline_mode<synchronous>, transform_indices = @transform_3, window_bounds = array<i64: 4, 1, 128>}, {pipeline_mode = #tpu.pipeline_mode<synchronous>, transform_indices = @transform_4, window_bounds = array<i64: 1, 128>}, {transform_indices = @transform_5, window_bounds = array<i64: 8, 128>}]} {
    %c0 = arith.constant 0 : index
    %c0_0 = arith.constant 0 : index
    %0 = vector.load %arg1[%c0, %c0_0] : memref<8x32xf32, #tpu.memory_space<vmem>>, vector<8x32xf32>
    %c0_1 = arith.constant 0 : index
    %c0_2 = arith.constant 0 : index
    %1 = vector.load %arg2[%c0_1, %c0_2] : memref<32x512xf32, #tpu.memory_space<vmem>>, vector<32x512xf32>
    %cst = arith.constant dense<0.000000e+00> : vector<8x512xf32>
    %2 = tpu.matmul %0, %1, %cst {dimension_numbers = #tpu.dot_dimension_numbers<[1], [0], [0], [1], [0, 0, 1, 1], [], []>} : vector<8x32xf32>, vector<32x512xf32>, vector<8x512xf32> -> vector<8x512xf32>
    %c0_3 = arith.constant 0 : index
    %c0_4 = arith.constant 0 : index
    %3 = vector.load %arg3[%c0_3, %c0_4] : memref<1x512xf32, #tpu.memory_space<vmem>>, vector<1x512xf32>
    %4 = vector.broadcast %3 : vector<1x512xf32> to vector<8x512xf32>
    %5 = arith.addf %2, %4 : vector<8x512xf32>
    %cst_5 = arith.constant 1.000000e-01 : f32
    %6 = vector.broadcast %cst_5 : f32 to vector<8x512xf32>
    %7 = arith.mulf %6, %5 : vector<8x512xf32>
    %8 = arith.maximumf %5, %7 : vector<8x512xf32>
    %c0_6 = arith.constant 0 : index
    %c0_7 = arith.constant 0 : index
    %9 = vector.load %arg5[%c0_6, %c0_7] : memref<1x128xf32, #tpu.memory_space<vmem>>, vector<1x128xf32>
    %10 = vector.shape_cast %9 : vector<1x128xf32> to vector<1x128xf32>
    %11 = vector.broadcast %10 : vector<1x128xf32> to vector<8x128xf32>
    %12 = vector.extract_strided_slice %8 {offsets = [0, 0], sizes = [8, 128], strides = [1, 1]} : vector<8x512xf32> to vector<8x128xf32>
    %c0_8 = arith.constant 0 : index
    %c0_9 = arith.constant 0 : index
    %c0_10 = arith.constant 0 : index
    %13 = vector.load %arg4[%c0_8, %c0_9, %c0_10] : memref<4x1x128xf32, #tpu.memory_space<vmem>>, vector<1x1x128xf32>
    %14 = vector.shape_cast %13 : vector<1x1x128xf32> to vector<1x128xf32>
    %15 = vector.broadcast %14 : vector<1x128xf32> to vector<8x128xf32>
    %16 = arith.mulf %12, %15 : vector<8x128xf32>
    %17 = arith.addf %11, %16 : vector<8x128xf32>
    %18 = vector.extract_strided_slice %8 {offsets = [0, 128], sizes = [8, 128], strides = [1, 1]} : vector<8x512xf32> to vector<8x128xf32>
    %c1 = arith.constant 1 : index
    %c0_11 = arith.constant 0 : index
    %c0_12 = arith.constant 0 : index
    %19 = vector.load %arg4[%c1, %c0_11, %c0_12] : memref<4x1x128xf32, #tpu.memory_space<vmem>>, vector<1x1x128xf32>
    %20 = vector.shape_cast %19 : vector<1x1x128xf32> to vector<1x128xf32>
    %21 = vector.broadcast %20 : vector<1x128xf32> to vector<8x128xf32>
    %22 = arith.mulf %18, %21 : vector<8x128xf32>
    %23 = arith.addf %17, %22 : vector<8x128xf32>
    %24 = vector.extract_strided_slice %8 {offsets = [0, 256], sizes = [8, 128], strides = [1, 1]} : vector<8x512xf32> to vector<8x128xf32>
    %c2 = arith.constant 2 : index
    %c0_13 = arith.constant 0 : index
    %c0_14 = arith.constant 0 : index
    %25 = vector.load %arg4[%c2, %c0_13, %c0_14] : memref<4x1x128xf32, #tpu.memory_space<vmem>>, vector<1x1x128xf32>
    %26 = vector.shape_cast %25 : vector<1x1x128xf32> to vector<1x128xf32>
    %27 = vector.broadcast %26 : vector<1x128xf32> to vector<8x128xf32>
    %28 = arith.mulf %24, %27 : vector<8x128xf32>
    %29 = arith.addf %23, %28 : vector<8x128xf32>
    %30 = vector.extract_strided_slice %8 {offsets = [0, 384], sizes = [8, 128], strides = [1, 1]} : vector<8x512xf32> to vector<8x128xf32>
    %c3 = arith.constant 3 : index
    %c0_15 = arith.constant 0 : index
    %c0_16 = arith.constant 0 : index
    %31 = vector.load %arg4[%c3, %c0_15, %c0_16] : memref<4x1x128xf32, #tpu.memory_space<vmem>>, vector<1x1x128xf32>
    %32 = vector.shape_cast %31 : vector<1x1x128xf32> to vector<1x128xf32>
    %33 = vector.broadcast %32 : vector<1x128xf32> to vector<8x128xf32>
    %34 = arith.mulf %30, %33 : vector<8x128xf32>
    %35 = arith.addf %29, %34 : vector<8x128xf32>
    %cst_17 = arith.constant 1.000000e-01 : f32
    %36 = vector.broadcast %cst_17 : f32 to vector<8x128xf32>
    %37 = arith.mulf %36, %35 : vector<8x128xf32>
    %38 = arith.maximumf %35, %37 : vector<8x128xf32>
    %c0_18 = arith.constant 0 : index
    %c0_19 = arith.constant 0 : index
    %39 = vector.load %arg6[%c0_18, %c0_19] : memref<8x128xf32, #tpu.memory_space<vmem>>, vector<8x128xf32>
    tpu.vector_store %arg6[%c0_18, %c0_19], %38 {strides = array<i32>} : memref<8x128xf32, #tpu.memory_space<vmem>>, vector<8x128xf32>,
    return
  }
  func.func @transform_0(%arg0: i32) -> (i32, i32) {
    %c0_i32 = arith.constant 0 : i32
    %c0_i32_0 = arith.constant 0 : i32
    return %arg0, %c0_i32 : i32, i32
  }
  func.func @transform_1(%arg0: i32) -> (i32, i32) {
    %c0_i32 = arith.constant 0 : i32
    %c0_i32_0 = arith.constant 0 : i32
    %c0_i32_1 = arith.constant 0 : i32
    return %c0_i32, %c0_i32_0 : i32, i32
  }
  func.func @transform_2(%arg0: i32) -> (i32, i32) {
    %c0_i32 = arith.constant 0 : i32
    %c0_i32_0 = arith.constant 0 : i32
    %c0_i32_1 = arith.constant 0 : i32
    return %c0_i32, %c0_i32_0 : i32, i32
  }
  func.func @transform_3(%arg0: i32) -> (i32, i32, i32) {
    %c0_i32 = arith.constant 0 : i32
    %c0_i32_0 = arith.constant 0 : i32
    %c0_i32_1 = arith.constant 0 : i32
    %c0_i32_2 = arith.constant 0 : i32
    return %c0_i32, %c0_i32_0, %c0_i32_1 : i32, i32, i32
  }
  func.func @transform_4(%arg0: i32) -> (i32, i32) {
    %c0_i32 = arith.constant 0 : i32
    %c0_i32_0 = arith.constant 0 : i32
    %c0_i32_1 = arith.constant 0 : i32
    return %c0_i32, %c0_i32_0 : i32, i32
  }
  func.func @transform_5(%arg0: i32) -> (i32, i32) {
    %c0_i32 = arith.constant 0 : i32
    %c0_i32_0 = arith.constant 0 : i32
    return %arg0, %c0_i32 : i32, i32
  }
}

</mosaic_0001>

<llo_original>
// kernel: tpu_custom_call.1
$region0: #{tpu_custom_call.1}
  #allocation0 [shape = 'u32[]', space=smem, size = 0x4, offset = 0x4, fixed_abs, tag = 'smem constant byte address 0x4 - core index']
  #allocation1 [shape = 'u32[72,128]{1,0:T(1,128)}', space=vmem, size = 0x9000, scoped, tag = 'internal scratch']
  %s0 = inlined_call_operand.hbm [shape: f32[8,32], index: 0, kind: input, shape index: {}]
  %s1 = inlined_call_operand.hbm [shape: f32[32,512], index: 1, kind: input, shape index: {}]
  %s2 = inlined_call_operand.hbm [shape: f32[1,512], index: 2, kind: input, shape index: {}]
  %s3 = inlined_call_operand.hbm [shape: f32[4,1,128], index: 3, kind: input, shape index: {}]
  %s4 = inlined_call_operand.vmem [shape: f32[1,128], index: 4, kind: input, shape index: {}]
  %s5 = inlined_call_operand.hbm [shape: f32[8,128], index: 5, kind: output, shape index: {}]
  %s6 = sld [smem:[#allocation0]]
  $region46: #{tpu_custom_call.1} parent=0
    _
  %s8 = ssub.s32 1, %s6
  %s9 = scalar_select 0, %s8, %s6
  $region1: #{tpu_custom_call.1} parent=0
    #allocation2 [shape = 'u8[4096]{0}', space=vmem, size = 0x1000, scoped, tag = 'input window, operand 0, single buffered']
    #allocation3 [shape = 's32[1]{0}', space=sflag, size = 0x4, scoped, tag = 'scoped memory for tpu_custom_call.1']
    #allocation4 [shape = 's32[1]{0}', space=sflag, size = 0x4, scoped, tag = 'scoped memory for tpu_custom_call.1']
    #allocation5 [shape = 'u8[65536]{0}', space=vmem, size = 0x10000, scoped, tag = 'input window, operand 1, single buffered']
    #allocation6 [shape = 's32[1]{0}', space=sflag, size = 0x4, scoped, tag = 'scoped memory for tpu_custom_call.1']
    #allocation7 [shape = 'u8[2048]{0}', space=vmem, size = 0x800, scoped, tag = 'input window, operand 2, single buffered']
    #allocation8 [shape = 'u8[2048]{0}', space=vmem, size = 0x800, scoped, tag = 'input window, operand 3, single buffered']
    #allocation9 [shape = 's32[1]{0}', space=sflag, size = 0x4, scoped, tag = 'scoped memory for tpu_custom_call.1']
    #allocation10 [shape = 'u8[4096]{0}', space=vmem, size = 0x1000, scoped, tag = 'output window, operand 0, single buffered']
    %10 = vsyncpa [#allocation3], 0
    %11 = vsyncpa [#allocation6], 0
    %12 = vsyncpa [#allocation9], 0
    %13 = vsyncpa [#allocation4], 0
    // Predicated region
    $region2: #{tpu_custom_call.1} parent=1 // pred_check
      _
    $region3: #{tpu_custom_call.1} parent=1 // pred_check_branch
      %15 = sbr.rel (0) target = $region5
    $region4: #{tpu_custom_call.1} parent=1 // pred_region
      %17 = vsyncadd [#allocation3], 0
      %s19 = sshll.u32 %s0, 4
      %s20 = int_to_ptr.hbm [resolvable:$true] %s19
      %s21 = sshll.u32 [#allocation2], 4
      %s22 = int_to_ptr.vmem [resolvable:$true] %s21
      %24 = dma.hbm_to_vmem [thread:$0]  %s20, 128, %s22, [#allocation3]
    $region5: #{tpu_custom_call.1} parent=1 // pred_fallthru
      _
    // Predicated region
    $region6: #{tpu_custom_call.1} parent=1 // pred_check
      _
    $region7: #{tpu_custom_call.1} parent=1 // pred_check_branch
      %26 = sbr.rel (0) target = $region9
    $region8: #{tpu_custom_call.1} parent=1 // pred_region
      %28 = vsyncadd [#allocation6], 0
      %s29 = sshll.u32 %s1, 4
      %s30 = int_to_ptr.hbm [resolvable:$true] %s29
      %s31 = sshll.u32 [#allocation5], 4
      %s32 = int_to_ptr.vmem [resolvable:$true] %s31
      %37 = dma.hbm_to_vmem [thread:$0]  %s30, 2048, %s32, [#allocation6], 512, 512, 32
    $region9: #{tpu_custom_call.1} parent=1 // pred_fallthru
      _
    // Predicated region
    $region10: #{tpu_custom_call.1} parent=1 // pred_check
      _
    $region11: #{tpu_custom_call.1} parent=1 // pred_check_branch
      %39 = sbr.rel (0) target = $region13
    $region12: #{tpu_custom_call.1} parent=1 // pred_region
      %41 = vsyncadd [#allocation6], 0
      %s43 = sshll.u32 %s2, 4
      %s44 = int_to_ptr.hbm [resolvable:$true] %s43
      %s45 = sshll.u32 [#allocation7], 4
      %s46 = int_to_ptr.vmem [resolvable:$true] %s45
      %48 = dma.hbm_to_vmem [thread:$0]  %s44, 64, %s46, [#allocation6]
    $region13: #{tpu_custom_call.1} parent=1 // pred_fallthru
      _
    // Predicated region
    $region14: #{tpu_custom_call.1} parent=1 // pred_check
      _
    $region15: #{tpu_custom_call.1} parent=1 // pred_check_branch
      %50 = sbr.rel (0) target = $region17
    $region16: #{tpu_custom_call.1} parent=1 // pred_region
      %52 = vsyncadd [#allocation9], 0
      %s53 = sshll.u32 %s3, 4
      %s54 = int_to_ptr.hbm [resolvable:$true] %s53
      %s55 = sshll.u32 [#allocation8], 4
      %s56 = int_to_ptr.vmem [resolvable:$true] %s55
      %61 = dma.hbm_to_vmem [thread:$0]  %s54, 64, %s56, [#allocation9], 16, 16, 1
    $region17: #{tpu_custom_call.1} parent=1 // pred_fallthru
      _
    // Predicated region
    $region18: #{tpu_custom_call.1} parent=1 // pred_check
      _
    $region19: #{tpu_custom_call.1} parent=1 // pred_check_branch
      %63 = sbr.rel (0) target = $region21
    $region20: #{tpu_custom_call.1} parent=1 // pred_region
      _
    $region21: #{tpu_custom_call.1} parent=1 // pred_fallthru
      _
    // Predicated region
    $region22: #{tpu_custom_call.1} parent=1 // pred_check
      _
    $region23: #{tpu_custom_call.1} parent=1 // pred_check_branch
      %65 = sbr.rel (0) target = $region25
    $region24: #{tpu_custom_call.1} parent=1 // pred_region
      %67 = dma.done [#allocation3], 128
    $region25: #{tpu_custom_call.1} parent=1 // pred_fallthru
      _
    // Predicated region
    $region26: #{tpu_custom_call.1} parent=1 // pred_check
      _
    $region27: #{tpu_custom_call.1} parent=1 // pred_check_branch
      %69 = sbr.rel (0) target = $region29
    $region28: #{tpu_custom_call.1} parent=1 // pred_region
      %71 = dma.done [#allocation6], 2048
    $region29: #{tpu_custom_call.1} parent=1 // pred_fallthru
      _
    // Predicated region
    $region30: #{tpu_custom_call.1} parent=1 // pred_check
      _
    $region31: #{tpu_custom_call.1} parent=1 // pred_check_branch
      %73 = sbr.rel (0) target = $region33
    $region32: #{tpu_custom_call.1} parent=1 // pred_region
      %75 = dma.done [#allocation6], 64
    $region33: #{tpu_custom_call.1} parent=1 // pred_fallthru
      _
    // Predicated region
    $region34: #{tpu_custom_call.1} parent=1 // pred_check
      _
    $region35: #{tpu_custom_call.1} parent=1 // pred_check_branch
      %77 = sbr.rel (0) target = $region37
    $region36: #{tpu_custom_call.1} parent=1 // pred_region
      %79 = dma.done [#allocation9], 64
    $region37: #{tpu_custom_call.1} parent=1 // pred_fallthru
      _
    %v80 = vld [vmem:[#allocation2] sm:$0xff]
    %v81 = vld [vmem:[#allocation5] sm:$0xff]
    %v82 = vld [vmem:[#allocation5 + $0x8] sm:$0xff]
    %v83 = vld [vmem:[#allocation5 + $0x10] sm:$0xff]
    %v84 = vld [vmem:[#allocation5 + $0x18] sm:$0xff]
    %v85 = vld [vmem:[#allocation5 + $0x20] sm:$0xff]
    %v86 = vld [vmem:[#allocation5 + $0x28] sm:$0xff]
    %v87 = vld [vmem:[#allocation5 + $0x30] sm:$0xff]
    %v88 = vld [vmem:[#allocation5 + $0x38] sm:$0xff]
    %v89 = vld [vmem:[#allocation5 + $0x40] sm:$0xff]
    %v90 = vld [vmem:[#allocation5 + $0x48] sm:$0xff]
    %v91 = vld [vmem:[#allocation5 + $0x50] sm:$0xff]
    %v92 = vld [vmem:[#allocation5 + $0x58] sm:$0xff]
    %v93 = vld [vmem:[#allocation5 + $0x60] sm:$0xff]
    %v94 = vld [vmem:[#allocation5 + $0x68] sm:$0xff]
    %v95 = vld [vmem:[#allocation5 + $0x70] sm:$0xff]
    %v96 = vld [vmem:[#allocation5 + $0x78] sm:$0xff]
    %v97 = vld [vmem:[#allocation7] sm:$0xf]
    %v99 = vperm.slane %v97, 0
    %v100 = vperm.slane %v97, 1
    %v101 = vperm.slane %v97, 2
    %v102 = vperm.slane %v97, 3
    %vm107 = vcmask 261120
    %v109 = vsel %vm107, %v80, 0
    %111 = vmatpush.msra.mxu0 0.0
    %112 = vmatpush.msra.mxu0 0.0
    %113 = vmatpush.msra.mxu0 0.0
    %114 = vmatpush.msra.mxu0 0.0
    %115 = vmatpush.msra.mxu0 0.0
    %116 = vmatpush.msra.mxu0 0.0
    %117 = vmatpush.msra.mxu0 0.0
    %118 = vmatpush.msra.mxu0 0.0
    %119 = vmatpush.msra.mxu0 0.0
    %120 = vmatpush.msra.mxu0 0.0
    %121 = vmatpush.msra.mxu0 0.0
    %122 = vmatpush.msra.mxu0 0.0
    %123 = vmatpush.msra.mxu0 %v93
    %124 = vmatpush.msra.mxu0 %v89
    %125 = vmatpush.msra.mxu0 %v85
    %126 = vmatpush.msra.mxu0 %v81
    %127 = vmatmul.f32.gmra.mxu0 %v109
    %v128 = vpop.f32.mrf.mxu0
    %v129 = vadd.f32 %v99, %v128
    %130 = vdwg.mxu0
    %131 = vmatpush.msra.mxu0 0.0
    %132 = vmatpush.msra.mxu0 0.0
    %133 = vmatpush.msra.mxu0 0.0
    %134 = vmatpush.msra.mxu0 0.0
    %135 = vmatpush.msra.mxu0 0.0
    %136 = vmatpush.msra.mxu0 0.0
    %137 = vmatpush.msra.mxu0 0.0
    %138 = vmatpush.msra.mxu0 0.0
    %139 = vmatpush.msra.mxu0 0.0
    %140 = vmatpush.msra.mxu0 0.0
    %141 = vmatpush.msra.mxu0 0.0
    %142 = vmatpush.msra.mxu0 0.0
    %143 = vmatpush.msra.mxu0 %v94
    %144 = vmatpush.msra.mxu0 %v90
    %145 = vmatpush.msra.mxu0 %v86
    %146 = vmatpush.msra.mxu0 %v82
    %147 = vmatmul.f32.gmra.mxu0 %v109
    %v148 = vpop.f32.mrf.mxu0
    %v149 = vadd.f32 %v100, %v148
    %150 = vdwg.mxu0
    %151 = vmatpush.msra.mxu0 0.0
    %152 = vmatpush.msra.mxu0 0.0
    %153 = vmatpush.msra.mxu0 0.0
    %154 = vmatpush.msra.mxu0 0.0
    %155 = vmatpush.msra.mxu0 0.0
    %156 = vmatpush.msra.mxu0 0.0
    %157 = vmatpush.msra.mxu0 0.0
    %158 = vmatpush.msra.mxu0 0.0
    %159 = vmatpush.msra.mxu0 0.0
    %160 = vmatpush.msra.mxu0 0.0
    %161 = vmatpush.msra.mxu0 0.0
    %162 = vmatpush.msra.mxu0 0.0
    %163 = vmatpush.msra.mxu0 %v95
    %164 = vmatpush.msra.mxu0 %v91
    %165 = vmatpush.msra.mxu0 %v87
    %166 = vmatpush.msra.mxu0 %v83
    %167 = vmatmul.f32.gmra.mxu0 %v109
    %v168 = vpop.f32.mrf.mxu0
    %v169 = vadd.f32 %v101, %v168
    %170 = vdwg.mxu0
    %171 = vmatpush.msra.mxu0 0.0
    %172 = vmatpush.msra.mxu0 0.0
    %173 = vmatpush.msra.mxu0 0.0
    %174 = vmatpush.msra.mxu0 0.0
    %175 = vmatpush.msra.mxu0 0.0
    %176 = vmatpush.msra.mxu0 0.0
    %177 = vmatpush.msra.mxu0 0.0
    %178 = vmatpush.msra.mxu0 0.0
    %179 = vmatpush.msra.mxu0 0.0
    %180 = vmatpush.msra.mxu0 0.0
    %181 = vmatpush.msra.mxu0 0.0
    %182 = vmatpush.msra.mxu0 0.0
    %183 = vmatpush.msra.mxu0 %v96
    %184 = vmatpush.msra.mxu0 %v92
    %185 = vmatpush.msra.mxu0 %v88
    %186 = vmatpush.msra.mxu0 %v84
    %187 = vmatmul.f32.gmra.mxu0 %v109
    %v188 = vpop.f32.mrf.mxu0
    %v189 = vadd.f32 %v102, %v188
    %190 = vdwg.mxu0
    %v191 = vmul.f32 %v129, 0.1
    %v192 = vmul.f32 %v149, 0.1
    %v193 = vmul.f32 %v169, 0.1
    %v194 = vmul.f32 %v189, 0.1
    %v195 = vmax.f32 %v129, %v191
    %v196 = vmax.f32 %v149, %v192
    %v197 = vmax.f32 %v169, %v193
    %v198 = vmax.f32 %v189, %v194
    %v199 = vld [vmem:[%s4] sm:$0x1]
    %v201 = vperm.slane %v199, 0
    %v203 = vld [vmem:[#allocation8] sm:$0x1]
    %v205 = vperm.slane %v203, 0
    %v207 = vmul.f32 %v195, %v205
    %v208 = vadd.f32 %v201, %v207
    %s209 = scalar_lea.vmem [#allocation8], 1
    %v210 = vld [vmem:[%s209] sm:$0x1]
    %v212 = vperm.slane %v210, 0
    %v214 = vmul.f32 %v196, %v212
    %v215 = vadd.f32 %v208, %v214
    %s216 = scalar_lea.vmem [#allocation8], 2
    %v217 = vld [vmem:[%s216] sm:$0x1]
    %v219 = vperm.slane %v217, 0
    %v221 = vmul.f32 %v197, %v219
    %v222 = vadd.f32 %v215, %v221
    %s223 = scalar_lea.vmem [#allocation8], 3
    %v224 = vld [vmem:[%s223] sm:$0x1]
    %v226 = vperm.slane %v224, 0
    %v228 = vmul.f32 %v198, %v226
    %v229 = vadd.f32 %v222, %v228
    %v230 = vmul.f32 %v229, 0.1
    %v231 = vmax.f32 %v229, %v230
    %232 = vst [vmem:[#allocation10] sm:$0xff] %v231
    // Predicated region
    $region38: #{tpu_custom_call.1} parent=1 // pred_check
      _
    $region39: #{tpu_custom_call.1} parent=1 // pred_check_branch
      %234 = sbr.rel (0) target = $region41
    $region40: #{tpu_custom_call.1} parent=1 // pred_region
      %236 = vsyncadd [#allocation4], 0
      %s238 = sshll.u32 [#allocation10], 4
      %s239 = int_to_ptr.vmem [resolvable:$true] %s238
      %s240 = sshll.u32 %s5, 4
      %s241 = int_to_ptr.hbm [resolvable:$true] %s240
      %243 = dma.vmem_to_hbm [thread:$0]  %s239, 128, %s241, [#allocation4]
    $region41: #{tpu_custom_call.1} parent=1 // pred_fallthru
      _
    // Predicated region
    $region42: #{tpu_custom_call.1} parent=1 // pred_check
      _
    $region43: #{tpu_custom_call.1} parent=1 // pred_check_branch
      %245 = sbr.rel (0) target = $region45
    $region44: #{tpu_custom_call.1} parent=1 // pred_region
      %247 = dma.done [#allocation4], 128
    $region45: #{tpu_custom_call.1} parent=1 // pred_fallthru
      _
    %248 = vsyncpa [#allocation3], 1
    %249 = vsyncpa [#allocation6], 1
    %250 = vsyncpa [#allocation9], 1
    %251 = vsyncpa [#allocation4], 1

</llo_original>
